<compile_context>
chip_gen: v5e
topology: v5e:2x2
jax: 0.10.0
libtpu: 0.0.40
codegen_flags: <defaults>
</compile_context>

<pallas_src>
import jax
import jax.numpy as jnp
from jax.experimental import pallas as pl
from jax.experimental.pallas import tpu as pltpu


def _prompt_block_kernel(x_ref, w_ref, b_ref, out_ref):
    # x_ref:   (nb, C, TILE_HW)  channels on sublanes, pixels on lanes
    # w_ref:   (C, C)            folded weight W_eff (x.dtype)
    # b_ref:   (C, 1)            folded bias   b_eff (x.dtype)
    # out_ref: (nb, C, TILE_HW)
    w = w_ref[...]
    b = b_ref[...]
    for i in range(x_ref.shape[0]):           # static, small unrolled batch loop
        y = jnp.dot(w, x_ref[i], preferred_element_type=jnp.float32)
        y = y + b                             # (C,1) broadcasts across lanes
        out_ref[i] = y.astype(out_ref.dtype)


def prompt_block_forward(x_nchw, w1, b1, w2, b2, *,
                         max_tile_hw=256 * 1024,
                         vmem_budget_bytes=24 * 1024 * 1024):
    """x_nchw: (N, C, H, W); w1: (P, C); b1: (P,); w2: (C, C+P); b2: (C,)."""
    n, c, h, w = x_nchw.shape
    prompt_dim = w1.shape[0]
    assert w1.shape == (prompt_dim, c)
    assert b1.shape == (prompt_dim,)
    assert w2.shape == (c, c + prompt_dim)
    assert b2.shape == (c,)

    x_dtype = x_nchw.dtype
    itemsize = jnp.dtype(x_dtype).itemsize

    # ---- fold prompt_conv + concat + output_conv into one CxC affine map ----
    # PyTorch concat order is [x, prompt] => W2 column split [:c] / [c:].
    w2a = w2[:, :c].astype(jnp.float32)
    w2b = w2[:, c:].astype(jnp.float32)
    w_eff = (w2a + w2b @ w1.astype(jnp.float32)).astype(x_dtype)            # (C, C)
    b_eff = (w2b @ b1.astype(jnp.float32)
             + b2.astype(jnp.float32)).astype(x_dtype).reshape(c, 1)        # (C, 1)

    hw = h * w
    x3 = x_nchw.reshape(n, c, hw)            # free reshape; stays channels-first

    # ---- sublane fill: batch nb images per grid step when C is small --------
    pack_rows = 8 * max(1, 4 // itemsize)    # rows per vreg (f32: 8, bf16: 16)
    nb = min(n, max(1, pack_rows // c))

    # ---- pixel tile sized so per-step DMA dominates the ~0.35us overhead ----
    c_pad = ((c + pack_rows - 1) // pack_rows) * pack_rows
    per_lane_bytes = 2 * 2 * nb * c_pad * itemsize   # double-buffered in + out
    max_tile = vmem_budget_bytes // per_lane_bytes
    max_tile = min(max_tile, max_tile_hw)
    max_tile = max(128, (max_tile // 128) * 128)

    if hw <= 128:
        tile = hw                                    # full-extent block: legal
    elif hw <= max_tile and hw % 128 == 0:
        tile = hw
    else:
        tile = min(max_tile, (hw // 128) * 128)      # lane-dense; ragged tail OK

    # ---- megacore guard: ensure >= 2 grid steps so both v7x TCs get work ----
    if pl.cdiv(n, nb) * pl.cdiv(hw, tile) < 2:
        if tile >= 256 and tile % 128 == 0:
            tile = max(128, ((tile // 2) // 128) * 128)
        elif nb > 1:
            nb = max(1, nb // 2)

    grid = (pl.cdiv(n, nb), pl.cdiv(hw, tile))

    # Explicit scoped-VMEM limit: above v5e's 16 MiB default, under v7x's
    # 64 MiB physical.
    footprint = per_lane_bytes * tile + 4 * w_eff.size * itemsize + (1 << 20)
    vmem_limit = int(min(max(footprint, 32 * 1024 * 1024), 48 * 1024 * 1024))

    cost = pl.CostEstimate(
        flops=2 * n * hw * c * c,
        transcendentals=0,
        bytes_accessed=2 * n * c * hw * itemsize
        + (w_eff.size + b_eff.size) * itemsize,
    )

    out3 = pl.pallas_call(
        _prompt_block_kernel,
        out_shape=jax.ShapeDtypeStruct((n, c, hw), x_dtype),
        grid_spec=pltpu.PrefetchScalarGridSpec(
            num_scalar_prefetch=0,
            grid=grid,
            in_specs=[
                pl.BlockSpec((nb, c, tile), lambda i, j: (i, 0, j)),  # x tile
                pl.BlockSpec((c, c), lambda i, j: (0, 0)),            # W_eff
                pl.BlockSpec((c, 1), lambda i, j: (0, 0)),            # b_eff
            ],
            out_specs=pl.BlockSpec((nb, c, tile), lambda i, j: (i, 0, j)),
        ),
        compiler_params=pltpu.CompilerParams(
            dimension_semantics=("parallel", "parallel"),
            vmem_limit_bytes=vmem_limit),
        cost_estimate=cost,
    )(x3, w_eff, b_eff)

    return out3.reshape(n, c, h, w)


def _reference_forward(x_nchw, w1, b1, w2, b2):
    """Pure-JAX reference matching PyTorch semantics (unfused conv/cat/conv)."""
    x = jnp.transpose(x_nchw, (0, 2, 3, 1))                        # NHWC
    prompt = jnp.einsum("nhwc,pc->nhwp", x, w1) + b1
    combined = jnp.concatenate([x, prompt], axis=-1)
    out = jnp.einsum("nhwk,ck->nhwc", combined, w2) + b2
    return jnp.transpose(out, (0, 3, 1, 2))                        # NCHW


if __name__ == "__main__":
    # Small shapes consistent with the module.
    N, C, H, W = 2, 4, 16, 16
    PROMPT_DIM = 8

    key = jax.random.PRNGKey(0)
    kx, kw1, kb1, kw2, kb2 = jax.random.split(key, 5)

    x = jax.random.normal(kx, (N, C, H, W), dtype=jnp.float32)

    # Parameter shapes match nn.Conv2d with kernel_size=1 (1x1 spatial squeezed).
    w1 = jax.random.normal(kw1, (PROMPT_DIM, C), dtype=jnp.float32) * 0.1
    b1 = jax.random.normal(kb1, (PROMPT_DIM,), dtype=jnp.float32) * 0.1
    w2 = jax.random.normal(kw2, (C, C + PROMPT_DIM), dtype=jnp.float32) * 0.1
    b2 = jax.random.normal(kb2, (C,), dtype=jnp.float32) * 0.1

    out = prompt_block_forward(x, w1, b1, w2, b2)
    out = jax.block_until_ready(out)

    ref = _reference_forward(x, w1, b1, w2, b2)
    assert out.shape == (N, C, H, W)
    assert jnp.allclose(out, ref, atol=1e-5, rtol=1e-5), "mismatch vs reference"

    print("KERNEL_OK")
</pallas_src>

<mosaic_0001>
module attributes {stable_mosaic.version = 11 : i64} {
  func.func @_prompt_block_kernel(%arg0: i32, %arg1: i32, %arg2: memref<2x4x128xf32, #tpu.memory_space<vmem>>, %arg3: memref<4x4xf32, #tpu.memory_space<vmem>>, %arg4: memref<4x1xf32, #tpu.memory_space<vmem>>, %arg5: memref<2x4x128xf32, #tpu.memory_space<vmem>>) attributes {dimension_semantics = [#tpu.dimension_semantics<parallel>, #tpu.dimension_semantics<parallel>], iteration_bounds = array<i64: 1, 2>, scalar_prefetch = 0 : i64, scratch_operands = 0 : i64, tpu.core_type = #tpu.core_type<tc>, window_params = [{transform_indices = @transform_0, window_bounds = array<i64: 2, 4, 128>}, {pipeline_mode = #tpu.pipeline_mode<synchronous>, transform_indices = @transform_1, window_bounds = array<i64: 4, 4>}, {pipeline_mode = #tpu.pipeline_mode<synchronous>, transform_indices = @transform_2, window_bounds = array<i64: 4, 1>}, {transform_indices = @transform_3, window_bounds = array<i64: 2, 4, 128>}]} {
    %c0 = arith.constant 0 : index
    %c0_0 = arith.constant 0 : index
    %0 = vector.load %arg3[%c0, %c0_0] : memref<4x4xf32, #tpu.memory_space<vmem>>, vector<4x4xf32>
    %c0_1 = arith.constant 0 : index
    %c0_2 = arith.constant 0 : index
    %1 = vector.load %arg4[%c0_1, %c0_2] : memref<4x1xf32, #tpu.memory_space<vmem>>, vector<4x1xf32>
    %c0_3 = arith.constant 0 : index
    %c0_4 = arith.constant 0 : index
    %c0_5 = arith.constant 0 : index
    %2 = vector.load %arg2[%c0_3, %c0_4, %c0_5] : memref<2x4x128xf32, #tpu.memory_space<vmem>>, vector<1x4x128xf32>
    %3 = vector.shape_cast %2 : vector<1x4x128xf32> to vector<4x128xf32>
    %cst = arith.constant dense<0.000000e+00> : vector<4x128xf32>
    %4 = tpu.matmul %0, %3, %cst {dimension_numbers = #tpu.dot_dimension_numbers<[1], [0], [0], [1], [0, 0, 1, 1], [], []>} : vector<4x4xf32>, vector<4x128xf32>, vector<4x128xf32> -> vector<4x128xf32>
    %5 = vector.broadcast %1 : vector<4x1xf32> to vector<4x128xf32>
    %6 = arith.addf %4, %5 : vector<4x128xf32>
    %c0_6 = arith.constant 0 : index
    %c0_7 = arith.constant 0 : index
    %c0_8 = arith.constant 0 : index
    %7 = vector.load %arg5[%c0_6, %c0_7, %c0_8] : memref<2x4x128xf32, #tpu.memory_space<vmem>>, vector<1x4x128xf32>
    %8 = vector.shape_cast %7 : vector<1x4x128xf32> to vector<4x128xf32>
    %9 = vector.shape_cast %6 : vector<4x128xf32> to vector<1x4x128xf32>
    tpu.vector_store %arg5[%c0_6, %c0_7, %c0_8], %9 {strides = array<i32>} : memref<2x4x128xf32, #tpu.memory_space<vmem>>, vector<1x4x128xf32>,
    %c1 = arith.constant 1 : index
    %c0_9 = arith.constant 0 : index
    %c0_10 = arith.constant 0 : index
    %10 = vector.load %arg2[%c1, %c0_9, %c0_10] : memref<2x4x128xf32, #tpu.memory_space<vmem>>, vector<1x4x128xf32>
    %11 = vector.shape_cast %10 : vector<1x4x128xf32> to vector<4x128xf32>
    %cst_11 = arith.constant dense<0.000000e+00> : vector<4x128xf32>
    %12 = tpu.matmul %0, %11, %cst_11 {dimension_numbers = #tpu.dot_dimension_numbers<[1], [0], [0], [1], [0, 0, 1, 1], [], []>} : vector<4x4xf32>, vector<4x128xf32>, vector<4x128xf32> -> vector<4x128xf32>
    %13 = vector.broadcast %1 : vector<4x1xf32> to vector<4x128xf32>
    %14 = arith.addf %12, %13 : vector<4x128xf32>
    %c1_12 = arith.constant 1 : index
    %c0_13 = arith.constant 0 : index
    %c0_14 = arith.constant 0 : index
    %15 = vector.load %arg5[%c1_12, %c0_13, %c0_14] : memref<2x4x128xf32, #tpu.memory_space<vmem>>, vector<1x4x128xf32>
    %16 = vector.shape_cast %15 : vector<1x4x128xf32> to vector<4x128xf32>
    %17 = vector.shape_cast %14 : vector<4x128xf32> to vector<1x4x128xf32>
    tpu.vector_store %arg5[%c1_12, %c0_13, %c0_14], %17 {strides = array<i32>} : memref<2x4x128xf32, #tpu.memory_space<vmem>>, vector<1x4x128xf32>,
    return
  }
  func.func @transform_0(%arg0: i32, %arg1: i32) -> (i32, i32, i32) {
    %c0_i32 = arith.constant 0 : i32
    %c0_i32_0 = arith.constant 0 : i32
    return %arg0, %c0_i32, %arg1 : i32, i32, i32
  }
  func.func @transform_1(%arg0: i32, %arg1: i32) -> (i32, i32) {
    %c0_i32 = arith.constant 0 : i32
    %c0_i32_0 = arith.constant 0 : i32
    %c0_i32_1 = arith.constant 0 : i32
    return %c0_i32, %c0_i32_0 : i32, i32
  }
  func.func @transform_2(%arg0: i32, %arg1: i32) -> (i32, i32) {
    %c0_i32 = arith.constant 0 : i32
    %c0_i32_0 = arith.constant 0 : i32
    %c0_i32_1 = arith.constant 0 : i32
    return %c0_i32, %c0_i32_0 : i32, i32
  }
  func.func @transform_3(%arg0: i32, %arg1: i32) -> (i32, i32, i32) {
    %c0_i32 = arith.constant 0 : i32
    %c0_i32_0 = arith.constant 0 : i32
    return %arg0, %c0_i32, %arg1 : i32, i32, i32
  }
}

</mosaic_0001>

<llo_original>
// kernel: tpu_custom_call.1
$region0: #{tpu_custom_call.1}
  #allocation0 [shape = 'u32[]', space=smem, size = 0x4, offset = 0x4, fixed_abs, tag = 'smem constant byte address 0x4 - core index']
  #allocation1 [shape = 'u32[72,128]{1,0:T(1,128)}', space=vmem, size = 0x9000, scoped, tag = 'internal scratch']
  %s0 = inlined_call_operand.hbm [shape: f32[2,4,256], index: 0, kind: input, shape index: {}]
  %s1 = inlined_call_operand.vmem [shape: f32[4,4], index: 1, kind: input, shape index: {}]
  %s2 = inlined_call_operand.vmem [shape: f32[4,1], index: 2, kind: input, shape index: {}]
  %s3 = inlined_call_operand.hbm [shape: f32[2,4,256], index: 3, kind: output, shape index: {}]
  %s4 = sld [smem:[#allocation0]]
  $region49: #{tpu_custom_call.1} parent=0
    _
  %s6 = ssub.s32 1, %s4
  %s7 = scalar_select 0, %s6, %s4
  $region1: #{tpu_custom_call.1} parent=0
    #allocation2 [shape = 'u8[8192]{0}', space=vmem, size = 0x2000, scoped, tag = 'input window, operand 0']
    #allocation3 [shape = 's32[2]{0}', space=sflag, size = 0x8, scoped, tag = 'scoped memory for tpu_custom_call.1']
    #allocation4 [shape = 's32[2]{0}', space=sflag, size = 0x8, scoped, tag = 'scoped memory for tpu_custom_call.1']
    #allocation5 [shape = 'u8[8192]{0}', space=vmem, size = 0x2000, scoped, tag = 'output window, operand 0']
    %8 = vsyncpa [#allocation3], 0
    %s9 = scalar_lea.sflag [#allocation3], 1
    %10 = vsyncpa %s9, 0
    %11 = vsyncpa [#allocation4], 0
    %s12 = scalar_lea.sflag [#allocation4], 1
    %13 = vsyncpa %s12, 0
    loop: start=0, step=1, limit=4
    $region2: #{tpu_custom_call.1} parent=1 // loop_pre_header
      _
    $region3: #{tpu_custom_call.1} parent=1 // loop_header
      %s15 = sphi 0, %s19
      %p16 = scmp.ge.s32.totalorder %s15, 4
      %s22 = sphi 0, %s34
      %s23 = sphi 0, %s30
      %s24 = sphi 0, %s22
      %s25 = sphi 0, %s23
      %s26 = sphi 0, %s24
      %s27 = sphi 0, %s25
      %s39 = sphi 0, %s41
      %s42 = sphi 0, %s39
      %s43 = sphi 0, %s42
      %s59 = sphi 0, %s43
      %s63 = sphi 0, %s63
      %s65 = sphi 0, %s63
      %s66 = sphi 0, %s65
      %s80 = sphi 0, %s66
      %s84 = sphi 0, %s84
      %s86 = sphi 0, %s84
      %s87 = sphi 0, %s86
      %s101 = sphi 0, %s87
      %s109 = sphi 0, %s111
      %s112 = sphi 0, %s109
      %s113 = sphi 0, %s112
      %s129 = sphi 0, %s113
    $region4: #{tpu_custom_call.1} parent=1 // loop_header_branch
      %18 = sbr.rel (%p16) target = $region8
    $region5: #{tpu_custom_call.1} parent=1 // loop_body
      %s20 = ssub.s32 %s15, 1
      %s21 = ssub.s32 %s15, 2
      %s28 = sadd.s32 1, %s23
      %p29 = scmp.ge.s32.totalorder %s28, 2
      %s30 = scalar_select %p29, 0, %s28
      %s31 = sadd.s32 1, %s22
      %s32 = scalar_select %p29, %s31, %s22
      %p33 = scmp.ge.s32.totalorder %s32, 1
      %s34 = scalar_select %p33, 0, %s32
      %s35 = ssub.s32 %s22, %s34
      %s36 = ssub.s32 %s23, %s30
      %s37 = sor.u32 %s35, %s36
      %p38 = scmp.eq.s32.totalorder %s37, 0
      %s40 = sadd.s32 %s39, 1
      %s41 = scalar_select %p38, %s39, %s40
      %p44 = pneg %p38
      %p45 = scmp.eq.s32.totalorder %s15, 1
      %p46 = por %p44, %p45
      %p47 = scmp.ne.s32.totalorder %s39, %s42
      %p48 = scmp.eq.s32.totalorder %s15, 0
      %p49 = por %p47, %p48
      %p50 = scmp.ne.s32.totalorder %s39, %s42
      %p51 = scmp.eq.s32.totalorder %s20, 1
      %p52 = por %p50, %p51
      %p53 = scmp.ne.s32.totalorder %s42, %s43
      %p54 = scmp.eq.s32.totalorder %s20, 0
      %p55 = por %p53, %p54
      %p56 = scmp.ne.s32.totalorder %s42, %s43
      %p57 = scmp.eq.s32.totalorder %s21, 1
      %p58 = por %p56, %p57
      %p60 = scmp.ne.s32.totalorder %s43, %s59
      %p61 = scmp.eq.s32.totalorder %s21, 0
      %p62 = por %p60, %p61
      %s64 = sadd.s32 %s63, 1
      %p67 = scmp.eq.s32.totalorder %s15, 1
      %p68 = scmp.ne.s32.totalorder %s63, %s65
      %p69 = scmp.eq.s32.totalorder %s15, 0
      %p70 = por %p68, %p69
      %p71 = scmp.ne.s32.totalorder %s63, %s65
      %p72 = scmp.eq.s32.totalorder %s20, 1
      %p73 = por %p71, %p72
      %p74 = scmp.ne.s32.totalorder %s65, %s66
      %p75 = scmp.eq.s32.totalorder %s20, 0
      %p76 = por %p74, %p75
      %p77 = scmp.ne.s32.totalorder %s65, %s66
      %p78 = scmp.eq.s32.totalorder %s21, 1
      %p79 = por %p77, %p78
      %p81 = scmp.ne.s32.totalorder %s66, %s80
      %p82 = scmp.eq.s32.totalorder %s21, 0
      %p83 = por %p81, %p82
      %s85 = sadd.s32 %s84, 1
      %p88 = scmp.eq.s32.totalorder %s15, 1
      %p89 = scmp.ne.s32.totalorder %s84, %s86
      %p90 = scmp.eq.s32.totalorder %s15, 0
      %p91 = por %p89, %p90
      %p92 = scmp.ne.s32.totalorder %s84, %s86
      %p93 = scmp.eq.s32.totalorder %s20, 1
      %p94 = por %p92, %p93
      %p95 = scmp.ne.s32.totalorder %s86, %s87
      %p96 = scmp.eq.s32.totalorder %s20, 0
      %p97 = por %p95, %p96
      %p98 = scmp.ne.s32.totalorder %s86, %s87
      %p99 = scmp.eq.s32.totalorder %s21, 1
      %p100 = por %p98, %p99
      %p102 = scmp.ne.s32.totalorder %s87, %s101
      %p103 = scmp.eq.s32.totalorder %s21, 0
      %p104 = por %p102, %p103
      %s105 = ssub.s32 %s22, %s34
      %s106 = ssub.s32 %s23, %s30
      %s107 = sor.u32 %s105, %s106
      %p108 = scmp.eq.s32.totalorder %s107, 0
      %s110 = sadd.s32 %s109, 1
      %s111 = scalar_select %p108, %s109, %s110
      %p114 = pneg %p108
      %p115 = scmp.eq.s32.totalorder %s15, 1
      %p116 = por %p114, %p115
      %p117 = scmp.ne.s32.totalorder %s109, %s112
      %p118 = scmp.eq.s32.totalorder %s15, 0
      %p119 = por %p117, %p118
      %p120 = scmp.ne.s32.totalorder %s109, %s112
      %p121 = scmp.eq.s32.totalorder %s20, 1
      %p122 = por %p120, %p121
      %p123 = scmp.ne.s32.totalorder %s112, %s113
      %p124 = scmp.eq.s32.totalorder %s20, 0
      %p125 = por %p123, %p124
      %p126 = scmp.ne.s32.totalorder %s112, %s113
      %p127 = scmp.eq.s32.totalorder %s21, 1
      %p128 = por %p126, %p127
      %p130 = scmp.ne.s32.totalorder %s113, %s129
      %p131 = scmp.eq.s32.totalorder %s21, 0
      %p132 = por %p130, %p131
      %p133 = scmp.le.s32.totalorder 1, %s15
      %p134 = scmp.lt.s32.totalorder %s15, 3
      %p135 = pnand %p133, %p134
      %p136 = pneg %p135
      // Predicated region
      $region9: #{tpu_custom_call.1} parent=5 // pred_check
        _
      $region10: #{tpu_custom_call.1} parent=5 // pred_check_branch
        %138 = sbr.rel (%p135) target = $region12
      $region11: #{tpu_custom_call.1} parent=5 // pred_region
        %s139 = ssub.s32 %s15, 1
        // Predicated region
        $region13: #{tpu_custom_call.1} parent=11 // pred_check
          %p140 = pneg %p76
        $region14: #{tpu_custom_call.1} parent=11 // pred_check_branch
          %142 = sbr.rel (%p140) target = $region16
        $region15: #{tpu_custom_call.1} parent=11 // pred_region
          _
        $region16: #{tpu_custom_call.1} parent=11 // pred_fallthru
          _
        // Predicated region
        $region17: #{tpu_custom_call.1} parent=11 // pred_check
          %p143 = pneg %p97
        $region18: #{tpu_custom_call.1} parent=11 // pred_check_branch
          %145 = sbr.rel (%p143) target = $region20
        $region19: #{tpu_custom_call.1} parent=11 // pred_region
          _
        $region20: #{tpu_custom_call.1} parent=11 // pred_fallthru
          _
      $region12: #{tpu_custom_call.1} parent=5 // pred_fallthru
        _
      %p146 = scmp.lt.s32.totalorder %s15, 2
      // Predicated region
      $region21: #{tpu_custom_call.1} parent=5 // pred_check
        %p147 = pneg %p146
      $region22: #{tpu_custom_call.1} parent=5 // pred_check_branch
        %149 = sbr.rel (%p147) target = $region24
      $region23: #{tpu_custom_call.1} parent=5 // pred_region
        // Predicated region
        $region25: #{tpu_custom_call.1} parent=23 // pred_check
          %p150 = pneg %p49
        $region26: #{tpu_custom_call.1} parent=23 // pred_check_branch
          %152 = sbr.rel (%p150) target = $region28
        $region27: #{tpu_custom_call.1} parent=23 // pred_region
          %s153 = sand.u32 %s39, 1
          %s154 = scalar_lea.sflag [#allocation3], %s153
          %s155 = sand.u32 %s39, 1
          %s156 = smul.addr %s155, 8
          %s157 = scalar_lea.vmem [#allocation2], %s156
          %s158 = smul.u32 2, %s22
          %160 = vsyncadd %s154, 0
          %s161 = smul.addr %s158, 2
          %s162 = sadd.s32 %s23, %s161
          %s163 = smul.addr %s162, 4
          %s164 = scalar_lea.hbm %s0, %s163
          %s165 = sshll.u32 %s164, 4
          %s166 = int_to_ptr.hbm [resolvable:$true] %s165
          %s167 = sshll.u32 %s157, 4
          %s168 = int_to_ptr.vmem [resolvable:$true] %s167
          %173 = dma.hbm_to_vmem [thread:$0]  %s166, 128, %s168, %s154, 128, 64, 4
        $region28: #{tpu_custom_call.1} parent=23 // pred_fallthru
          _
      $region24: #{tpu_custom_call.1} parent=5 // pred_fallthru
        _
      %p174 = scmp.le.s32.totalorder 1, %s15
      %p175 = scmp.lt.s32.totalorder %s15, 3
      %p176 = pnand %p174, %p175
      %p177 = pneg %p176
      // Predicated region
      $region29: #{tpu_custom_call.1} parent=5 // pred_check
        _
      $region30: #{tpu_custom_call.1} parent=5 // pred_check_branch
        %179 = sbr.rel (%p176) target = $region32
      $region31: #{tpu_custom_call.1} parent=5 // pred_region
        %s180 = ssub.s32 %s15, 1
        %s181 = sand.u32 %s42, 1
        %s182 = scalar_lea.sflag [#allocation3], %s181
        %s183 = sand.u32 %s42, 1
        %s184 = smul.addr %s183, 8
        %s185 = scalar_lea.vmem [#allocation2], %s184
        // Predicated region
        $region33: #{tpu_custom_call.1} parent=31 // pred_check
          %p186 = pneg %p55
        $region34: #{tpu_custom_call.1} parent=31 // pred_check_branch
          %188 = sbr.rel (%p186) target = $region36
        $region35: #{tpu_custom_call.1} parent=31 // pred_region
          %190 = dma.done %s182, 128
        $region36: #{tpu_custom_call.1} parent=31 // pred_fallthru
          _
        %s191 = sand.u32 %s42, 1
        %s192 = scalar_lea.sflag [#allocation3], %s191
        %s193 = sand.u32 %s42, 1
        %s194 = smul.addr %s193, 8
        %s195 = scalar_lea.vmem [#allocation2], %s194
        %p196 = pneg %p55
        %p197 = pneg %p52
        %p198 = pneg %p76
        %p199 = pneg %p73
        %p200 = pneg %p97
        %p201 = pneg %p94
        %p202 = pneg %p125
        %p203 = pneg %p122
        %s204 = sand.u32 %s112, 1
        %s205 = scalar_lea.sflag [#allocation4], %s204
        %s206 = sand.u32 %s112, 1
        %s207 = smul.addr %s206, 8
        %s208 = scalar_lea.vmem [#allocation5], %s207
        %s209 = smul.u32 2, %s24
        %s210 = smul.u32 2, %s24
        %v211 = vld [vmem:[%s1] sm:$0xf]
        %v212 = vld [vmem:[%s2] sm:$0xf]
        %v213 = vld [vmem:[%s185] sm:$0xf]
        %215 = vset.pattern.permute.xlu0 0
        %216 = vperm.xlu0 %215, %v212
        %v217 = vpop.permute.xlu0 %216
        %vm219 = vcmask 31744
        %v221 = vsel %vm219, %v211, 0
        %vm223 = vcmask 1043456
        %v225 = vsel %vm223, %v213, 0
        %227 = vmatpush.msra.mxu0 0.0
        %228 = vmatpush.msra.mxu0 0.0
        %229 = vmatpush.msra.mxu0 0.0
        %230 = vmatpush.msra.mxu0 0.0
        %231 = vmatpush.msra.mxu0 0.0
        %232 = vmatpush.msra.mxu0 0.0
        %233 = vmatpush.msra.mxu0 0.0
        %234 = vmatpush.msra.mxu0 0.0
        %235 = vmatpush.msra.mxu0 0.0
        %236 = vmatpush.msra.mxu0 0.0
        %237 = vmatpush.msra.mxu0 0.0
        %238 = vmatpush.msra.mxu0 0.0
        %239 = vmatpush.msra.mxu0 0.0
        %240 = vmatpush.msra.mxu0 0.0
        %241 = vmatpush.msra.mxu0 0.0
        %242 = vmatpush.msra.mxu0 %v225
        %243 = vmatmul.f32.gmra.mxu0 %v221
        %v244 = vpop.f32.mrf.mxu0
        %v245 = vadd.f32 %v217, %v244
        %246 = vdwg.mxu0
        %247 = vst [vmem:[%s208] sm:$0xf] %v245
        %s248 = scalar_lea.vmem %s185, 4 [#allocation2]
        %v249 = vld [vmem:[%s248] sm:$0xf]
        %v251 = vsel %vm223, %v249, 0
        %253 = vmatpush.msra.mxu0 0.0
        %254 = vmatpush.msra.mxu0 0.0
        %255 = vmatpush.msra.mxu0 0.0
        %256 = vmatpush.msra.mxu0 0.0
        %257 = vmatpush.msra.mxu0 0.0
        %258 = vmatpush.msra.mxu0 0.0
        %259 = vmatpush.msra.mxu0 0.0
        %260 = vmatpush.msra.mxu0 0.0
        %261 = vmatpush.msra.mxu0 0.0
        %262 = vmatpush.msra.mxu0 0.0
        %263 = vmatpush.msra.mxu0 0.0
        %264 = vmatpush.msra.mxu0 0.0
        %265 = vmatpush.msra.mxu0 0.0
        %266 = vmatpush.msra.mxu0 0.0
        %267 = vmatpush.msra.mxu0 0.0
        %268 = vmatpush.msra.mxu0 %v251
        %269 = vmatmul.f32.gmra.mxu0 %v221
        %v270 = vpop.f32.mrf.mxu0
        %v271 = vadd.f32 %v217, %v270
        %272 = vdwg.mxu0
        %s273 = scalar_lea.vmem %s208, 4 [#allocation5]
        %274 = vst [vmem:[%s273] sm:$0xf] %v271
        %s275 = sand.u32 %s112, 1
        %s276 = scalar_lea.sflag [#allocation4], %s275
        %s277 = sand.u32 %s112, 1
        %s278 = smul.addr %s277, 8
        %s279 = scalar_lea.vmem [#allocation5], %s278
        // Predicated region
        $region37: #{tpu_custom_call.1} parent=31 // pred_check
          %p280 = pneg %p122
        $region38: #{tpu_custom_call.1} parent=31 // pred_check_branch
          %282 = sbr.rel (%p280) target = $region40
        $region39: #{tpu_custom_call.1} parent=31 // pred_region
          %s283 = smul.u32 2, %s24
          %285 = vsyncadd %s276, 0
          %s286 = smul.addr %s283, 2
          %s287 = sadd.s32 %s25, %s286
          %s288 = smul.addr %s287, 4
          %s289 = scalar_lea.hbm %s3, %s288
          %s290 = sshll.u32 %s279, 4
          %s291 = int_to_ptr.vmem [resolvable:$true] %s290
          %s292 = sshll.u32 %s289, 4
          %s293 = int_to_ptr.hbm [resolvable:$true] %s292
          %298 = dma.vmem_to_hbm [thread:$0]  %s291, 128, %s293, %s276, 64, 128, 4
        $region40: #{tpu_custom_call.1} parent=31 // pred_fallthru
          _
      $region32: #{tpu_custom_call.1} parent=5 // pred_fallthru
        _
      %p299 = scmp.le.s32.totalorder 2, %s15
      // Predicated region
      $region41: #{tpu_custom_call.1} parent=5 // pred_check
        %p300 = pneg %p299
      $region42: #{tpu_custom_call.1} parent=5 // pred_check_branch
        %302 = sbr.rel (%p300) target = $region44
      $region43: #{tpu_custom_call.1} parent=5 // pred_region
        %s303 = ssub.s32 %s15, 2
        // Predicated region
        $region45: #{tpu_custom_call.1} parent=43 // pred_check
          %p304 = pneg %p128
        $region46: #{tpu_custom_call.1} parent=43 // pred_check_branch
          %306 = sbr.rel (%p304) target = $region48
        $region47: #{tpu_custom_call.1} parent=43 // pred_region
          %s307 = sand.u32 %s113, 1
          %s308 = scalar_lea.sflag [#allocation4], %s307
          %s309 = sand.u32 %s113, 1
          %s310 = smul.addr %s309, 8
          %s311 = scalar_lea.vmem [#allocation5], %s310
          %313 = dma.done %s308, 128
        $region48: #{tpu_custom_call.1} parent=43 // pred_fallthru
          _
      $region44: #{tpu_custom_call.1} parent=5 // pred_fallthru
        _
    $region6: #{tpu_custom_call.1} parent=1 // loop_footer
      %s19 = sadd.s32 1, %s15
    $region7: #{tpu_custom_call.1} parent=1 // loop_footer_branch
      %14 = sbr.rel target = $region3
    $region8: #{tpu_custom_call.1} parent=1 // loop_exit
      _
    %314 = vsyncpa [#allocation3], 1
    %s315 = scalar_lea.sflag [#allocation3], 1
    %316 = vsyncpa %s315, 1
    %317 = vsyncpa [#allocation4], 1
    %s318 = scalar_lea.sflag [#allocation4], 1
    %319 = vsyncpa %s318, 1

</llo_original>
